<compile_context>
chip_gen: v5e
topology: v5e:2x2
jax: 0.10.0
libtpu: 0.0.40
codegen_flags: <defaults>
</compile_context>

<pallas_src>
import functools

import jax
import jax.numpy as jnp
from jax.experimental import pallas as pl
from jax.experimental.pallas import tpu as pltpu


def _round_up(x, m):
    return ((x + m - 1) // m) * m


def _choose_tiles(n):
    """Returns (n_padded, tq, tk) for the aggregation pass.

    tq (row tile) is a multiple of 8, tk (contraction tile) is a multiple of
    128 or the full padded extent, and both divide n_padded, so every BlockSpec
    satisfies the (8, 128) rule with a bounded VMEM footprint regardless of N.
    """
    if n <= 512:
        n_p = _round_up(n, 8)
        return n_p, n_p, n_p          # single tile per batch element
    n_p = _round_up(n, 512)
    return n_p, 256, 512              # bounded tiles (v7x 64 MiB safe)


def _vmem_limit(need_bytes):
    # ~2x headroom over the estimated buffer sum, clamped to [32 MiB, 60 MiB]
    # (60 MiB stays under v7x's 64 MiB physical VMEM per TensorCore).
    return int(min(max(2 * need_bytes, 32 * 2**20), 60 * 2**20))


def _linear_kernel(x_ref, w_ref, b_ref, o_ref, *, mxu_dtype):
    # x_ref: (1, tq, D_in)    w_ref: (D_in, D_out) [mxu_dtype]
    # b_ref: (1, D_out) f32   o_ref: (1, tq, D_out)
    x = x_ref[0].astype(mxu_dtype)
    e = jnp.dot(x, w_ref[...], preferred_element_type=jnp.float32) + b_ref[...]
    o_ref[0] = e.astype(o_ref.dtype)


def _aggregate_kernel(e1_ref, a_ref, *refs, use_activation, use_residual,
                      mxu_dtype):
    # e1_ref: (1, tk, D_out)   a_ref: (1, tq, tk)
    # refs = ([x_ref (1,tq,D_in)], o_ref (1,tq,D_out), acc_ref (tq,D_out) f32)
    if use_residual:
        x_ref, o_ref, acc_ref = refs
    else:
        o_ref, acc_ref = refs

    k = pl.program_id(2)

    @pl.when(k == 0)
    def _():
        acc_ref[...] = jnp.zeros_like(acc_ref)

    # MXU: bf16 operands (cast on the VPU, overlapped), f32 accumulation.
    a = a_ref[0].astype(mxu_dtype)
    e1 = e1_ref[0].astype(mxu_dtype)
    acc_ref[...] += jnp.dot(a, e1, preferred_element_type=jnp.float32)

    @pl.when(k == pl.num_programs(2) - 1)
    def _():
        e = acc_ref[...]
        if use_activation:
            e = jnp.maximum(e, 0.0)
        if use_residual:
            e = e + x_ref[0].astype(jnp.float32)
        o_ref[0] = e.astype(o_ref.dtype)


def graph_convolution(X, A, masks, W, bias=None, *, activation=True,
                      use_residual=True, mxu_dtype=jnp.bfloat16):
    """Pallas implementation of GraphConvolution.forward (eval-mode defaults).

    X:     [B, N, D_in]   vertex embeddings
    A:     [B, N, N]      adjacency matrices
    masks: [B, N, N]      (only used by PaddedBatchnorm -> unused here)
    W:     [D_out, D_in]  nn.Linear weight (torch layout)
    bias:  [D_out] or None
    returns: [B, N, D_out] float32
    """
    del masks  # only consumed by the (disabled) PaddedBatchnorm branch
    f32 = jnp.float32
    B, N, D_in = X.shape
    D_out = W.shape[0]
    assert W.shape == (D_out, D_in)
    assert A.shape == (B, N, N)
    use_residual = bool(use_residual) and (D_in == D_out)
    use_activation = bool(activation)

    n_p, tq, tk = _choose_tiles(N)
    tq_lin = n_p if n_p <= 512 else 512     # bigger row tile for the linear pass

    X_in, A_in = X, A
    if n_p != N:
        # Zero-pad the vertex axis only (no feature padding). Zero rows/cols
        # contribute nothing and the padded output rows are sliced off below.
        X_in = jnp.zeros((B, n_p, D_in), X.dtype).at[:, :N, :].set(X)
        A_in = jnp.zeros((B, n_p, n_p), A.dtype).at[:, :N, :N].set(A)

    W_t = W.astype(mxu_dtype).T              # (D_in, D_out), tiny
    b_row = jnp.zeros((1, D_out), f32)
    if bias is not None:
        b_row = b_row.at[0, :].set(bias.astype(f32))

    e1_dtype = mxu_dtype                     # bf16 intermediate halves HBM/VMEM
    x_bytes = X_in.dtype.itemsize
    a_bytes = A_in.dtype.itemsize
    e1_bytes = W_t.dtype.itemsize

    # ---------------- pass 1: E1 = X @ W^T + b ----------------
    vmem1 = 2 * (tq_lin * D_in * x_bytes
                 + D_in * D_out * e1_bytes
                 + D_out * 4
                 + tq_lin * D_out * e1_bytes)
    flops1 = 2 * B * n_p * D_in * D_out
    bytes1 = (B * n_p * D_in * x_bytes + D_in * D_out * e1_bytes
              + D_out * 4 + B * n_p * D_out * e1_bytes)

    E1 = pl.pallas_call(
        functools.partial(_linear_kernel, mxu_dtype=mxu_dtype),
        out_shape=jax.ShapeDtypeStruct((B, n_p, D_out), e1_dtype),
        grid=(B, n_p // tq_lin),
        in_specs=[
            pl.BlockSpec((1, tq_lin, D_in), lambda b, j: (b, j, 0)),
            pl.BlockSpec((D_in, D_out), lambda b, j: (0, 0)),
            pl.BlockSpec((1, D_out), lambda b, j: (0, 0)),
        ],
        out_specs=pl.BlockSpec((1, tq_lin, D_out), lambda b, j: (b, j, 0)),
        compiler_params=pltpu.CompilerParams(
            dimension_semantics=("parallel", "parallel"),
            vmem_limit_bytes=_vmem_limit(vmem1)),
        cost_estimate=pl.CostEstimate(flops=flops1, transcendentals=0,
                                      bytes_accessed=bytes1),
    )(X_in, W_t, b_row)

    # ---------------- pass 2: out = relu(A @ E1) (+ X) ----------------
    in_specs = [
        pl.BlockSpec((1, tk, D_out), lambda b, j, k: (b, k, 0)),   # E1 (K tile)
        pl.BlockSpec((1, tq, tk), lambda b, j, k: (b, j, k)),      # A row/K tile
    ]
    args = [E1, A_in]
    if use_residual:
        in_specs.append(pl.BlockSpec((1, tq, D_in), lambda b, j, k: (b, j, 0)))
        args.append(X_in)

    vmem2 = (2 * (tk * D_out * e1_bytes
                  + tq * tk * a_bytes
                  + (tq * D_in * x_bytes if use_residual else 0)
                  + tq * D_out * 4)
             + tq * D_out * 4)               # f32 accumulator scratch
    flops2 = 2 * B * n_p * n_p * D_out
    bytes2 = (B * n_p * D_out * e1_bytes + B * n_p * n_p * a_bytes
              + (B * n_p * D_in * x_bytes if use_residual else 0)
              + B * n_p * D_out * 4)

    out_p = pl.pallas_call(
        functools.partial(_aggregate_kernel, use_activation=use_activation,
                          use_residual=use_residual, mxu_dtype=mxu_dtype),
        out_shape=jax.ShapeDtypeStruct((B, n_p, D_out), f32),
        grid=(B, n_p // tq, n_p // tk),
        in_specs=in_specs,
        out_specs=pl.BlockSpec((1, tq, D_out), lambda b, j, k: (b, j, 0)),
        scratch_shapes=[pltpu.VMEM((tq, D_out), f32)],
        compiler_params=pltpu.CompilerParams(
            # K (reduction) axis is last and "arbitrary" -> the accumulator
            # scratch / output-revisit pattern is valid; b and row tiles are
            # "parallel" so both v7x TensorCores get work even for B == 1.
            dimension_semantics=("parallel", "parallel", "arbitrary"),
            vmem_limit_bytes=_vmem_limit(vmem2)),
        cost_estimate=pl.CostEstimate(flops=flops2, transcendentals=0,
                                      bytes_accessed=bytes2),
    )(*args)

    if n_p != N:
        out_p = out_p[:, :N, :]
    return out_p


def _reference(X, A, W, bias, *, activation=True, use_residual=True):
    # Pure-JAX reference mirroring the PyTorch forward exactly.
    E = jnp.einsum("bnd,od->bno", X, W)
    if bias is not None:
        E = E + bias
    E = jnp.einsum("bij,bjo->bio", A, E)
    if activation:
        E = jnp.maximum(E, 0.0)
    if use_residual and X.shape[-1] == E.shape[-1]:
        E = E + X
    return E


if __name__ == "__main__":
    # Force identical matmul precision for the f32 verification path.
    jax.config.update("jax_default_matmul_precision", "highest")

    key = jax.random.PRNGKey(0)
    kx, ka, kw, kb = jax.random.split(key, 4)

    B, N, D = 2, 16, 32  # batch, vertices, features (D_in == D_out -> residual)

    X = jax.random.normal(kx, (B, N, D), dtype=jnp.float32)
    A = jax.random.uniform(ka, (B, N, N), dtype=jnp.float32)
    A = A / jnp.sum(A, axis=-1, keepdims=True)  # row-normalized adjacency
    W = jax.random.normal(kw, (D, D), dtype=jnp.float32) / jnp.sqrt(jnp.float32(D))
    bias = jax.random.normal(kb, (D,), dtype=jnp.float32) * 0.1

    # Padding mask (unused without batchnorm, but part of the module signature).
    n_valid = jnp.array([N, N - 5], dtype=jnp.int32)
    valid = (jnp.arange(N)[None, :] < n_valid[:, None]).astype(jnp.float32)
    masks = valid[:, :, None] * valid[:, None, :]

    ref = _reference(X, A, W, bias, activation=True, use_residual=True)

    # Strict check: f32 MXU operands must match the XLA reference tightly.
    out_f32 = graph_convolution(X, A, masks, W, bias, activation=True,
                                use_residual=True, mxu_dtype=jnp.float32)
    out_f32 = jax.block_until_ready(out_f32)
    assert out_f32.shape == (B, N, D)
    assert jnp.allclose(out_f32, ref, atol=1e-3, rtol=1e-3), "f32 path mismatch"

    # Fast path (default): bf16 MXU operands, f32 accumulation.
    out = graph_convolution(X, A, masks, W, bias, activation=True,
                            use_residual=True)
    out = jax.block_until_ready(out)
    assert out.shape == (B, N, D)
    assert jnp.allclose(out, ref, atol=5e-2, rtol=5e-2), "bf16 path mismatch"

    print("KERNEL_OK")
</pallas_src>

<mosaic_0001>
module attributes {stable_mosaic.version = 11 : i64} {
  func.func @_linear_kernel(%arg0: i32, %arg1: i32, %arg2: memref<1x16x32xf32, #tpu.memory_space<vmem>>, %arg3: memref<32x32xf32, #tpu.memory_space<vmem>>, %arg4: memref<1x32xf32, #tpu.memory_space<vmem>>, %arg5: memref<1x16x32xf32, #tpu.memory_space<vmem>>) attributes {dimension_semantics = [#tpu.dimension_semantics<parallel>, #tpu.dimension_semantics<parallel>], iteration_bounds = array<i64: 2, 1>, scalar_prefetch = 0 : i64, scratch_operands = 0 : i64, tpu.core_type = #tpu.core_type<tc>, window_params = [{transform_indices = @transform_0, window_bounds = array<i64: 1, 16, 32>}, {pipeline_mode = #tpu.pipeline_mode<synchronous>, transform_indices = @transform_1, window_bounds = array<i64: 32, 32>}, {pipeline_mode = #tpu.pipeline_mode<synchronous>, transform_indices = @transform_2, window_bounds = array<i64: 1, 32>}, {transform_indices = @transform_3, window_bounds = array<i64: 1, 16, 32>}]} {
    %c0 = arith.constant 0 : index
    %c0_0 = arith.constant 0 : index
    %c0_1 = arith.constant 0 : index
    %0 = vector.load %arg2[%c0, %c0_0, %c0_1] : memref<1x16x32xf32, #tpu.memory_space<vmem>>, vector<1x16x32xf32>
    %1 = vector.shape_cast %0 : vector<1x16x32xf32> to vector<16x32xf32>
    %c0_2 = arith.constant 0 : index
    %c0_3 = arith.constant 0 : index
    %2 = vector.load %arg3[%c0_2, %c0_3] : memref<32x32xf32, #tpu.memory_space<vmem>>, vector<32x32xf32>
    %cst = arith.constant dense<0.000000e+00> : vector<16x32xf32>
    %3 = tpu.matmul %1, %2, %cst {dimension_numbers = #tpu.dot_dimension_numbers<[1], [0], [0], [1], [0, 0, 1, 1], [], []>, precision = #tpu.contract_precision<fp32>} : vector<16x32xf32>, vector<32x32xf32>, vector<16x32xf32> -> vector<16x32xf32>
    %c0_4 = arith.constant 0 : index
    %c0_5 = arith.constant 0 : index
    %4 = vector.load %arg4[%c0_4, %c0_5] : memref<1x32xf32, #tpu.memory_space<vmem>>, vector<1x32xf32>
    %5 = vector.broadcast %4 : vector<1x32xf32> to vector<16x32xf32>
    %6 = arith.addf %3, %5 : vector<16x32xf32>
    %c0_6 = arith.constant 0 : index
    %c0_7 = arith.constant 0 : index
    %c0_8 = arith.constant 0 : index
    %7 = vector.load %arg5[%c0_6, %c0_7, %c0_8] : memref<1x16x32xf32, #tpu.memory_space<vmem>>, vector<1x16x32xf32>
    %8 = vector.shape_cast %7 : vector<1x16x32xf32> to vector<16x32xf32>
    %9 = vector.shape_cast %6 : vector<16x32xf32> to vector<1x16x32xf32>
    tpu.vector_store %arg5[%c0_6, %c0_7, %c0_8], %9 {strides = array<i32>} : memref<1x16x32xf32, #tpu.memory_space<vmem>>, vector<1x16x32xf32>,
    return
  }
  func.func @transform_0(%arg0: i32, %arg1: i32) -> (i32, i32, i32) {
    %c0_i32 = arith.constant 0 : i32
    %c0_i32_0 = arith.constant 0 : i32
    return %arg0, %arg1, %c0_i32 : i32, i32, i32
  }
  func.func @transform_1(%arg0: i32, %arg1: i32) -> (i32, i32) {
    %c0_i32 = arith.constant 0 : i32
    %c0_i32_0 = arith.constant 0 : i32
    %c0_i32_1 = arith.constant 0 : i32
    return %c0_i32, %c0_i32_0 : i32, i32
  }
  func.func @transform_2(%arg0: i32, %arg1: i32) -> (i32, i32) {
    %c0_i32 = arith.constant 0 : i32
    %c0_i32_0 = arith.constant 0 : i32
    %c0_i32_1 = arith.constant 0 : i32
    return %c0_i32, %c0_i32_0 : i32, i32
  }
  func.func @transform_3(%arg0: i32, %arg1: i32) -> (i32, i32, i32) {
    %c0_i32 = arith.constant 0 : i32
    %c0_i32_0 = arith.constant 0 : i32
    return %arg0, %arg1, %c0_i32 : i32, i32, i32
  }
}

</mosaic_0001>

<llo_original>
// kernel: tpu_custom_call.1
$region0: #{tpu_custom_call.1}
  #allocation0 [shape = 'u32[]', space=smem, size = 0x4, offset = 0x4, fixed_abs, tag = 'smem constant byte address 0x4 - core index']
  #allocation1 [shape = 'u32[72,128]{1,0:T(1,128)}', space=vmem, size = 0x9000, scoped, tag = 'internal scratch']
  %s0 = inlined_call_operand.hbm [shape: f32[2,16,32], index: 0, kind: input, shape index: {}]
  %s1 = inlined_call_operand.hbm [shape: f32[32,32], index: 1, kind: input, shape index: {}]
  %s2 = inlined_call_operand.vmem [shape: f32[1,32], index: 2, kind: input, shape index: {}]
  %s3 = inlined_call_operand.hbm [shape: f32[2,16,32], index: 3, kind: output, shape index: {}]
  %s4 = sld [smem:[#allocation0]]
  $region53: #{tpu_custom_call.1} parent=0
    _
  %s6 = ssub.s32 1, %s4
  %s7 = scalar_select 0, %s6, %s4
  $region1: #{tpu_custom_call.1} parent=0
    #allocation2 [shape = 'u8[16384]{0}', space=vmem, size = 0x4000, scoped, tag = 'input window, operand 0']
    #allocation3 [shape = 's32[2]{0}', space=sflag, size = 0x8, scoped, tag = 'scoped memory for tpu_custom_call.1']
    #allocation4 [shape = 's32[2]{0}', space=sflag, size = 0x8, scoped, tag = 'scoped memory for tpu_custom_call.1']
    #allocation5 [shape = 'u8[16384]{0}', space=vmem, size = 0x4000, scoped, tag = 'input window, operand 1, single buffered']
    #allocation6 [shape = 's32[1]{0}', space=sflag, size = 0x4, scoped, tag = 'scoped memory for tpu_custom_call.1']
    #allocation7 [shape = 'u8[16384]{0}', space=vmem, size = 0x4000, scoped, tag = 'output window, operand 0']
    %8 = vsyncpa [#allocation3], 0
    %s9 = scalar_lea.sflag [#allocation3], 1
    %10 = vsyncpa %s9, 0
    %11 = vsyncpa [#allocation6], 0
    %12 = vsyncpa [#allocation4], 0
    %s13 = scalar_lea.sflag [#allocation4], 1
    %14 = vsyncpa %s13, 0
    loop: start=0, step=1, limit=4
    $region2: #{tpu_custom_call.1} parent=1 // loop_pre_header
      _
    $region3: #{tpu_custom_call.1} parent=1 // loop_header
      %s16 = sphi 0, %s20
      %p17 = scmp.ge.s32.totalorder %s16, 4
      %s23 = sphi 0, %s35
      %s24 = sphi 0, %s31
      %s25 = sphi 0, %s23
      %s26 = sphi 0, %s24
      %s27 = sphi 0, %s25
      %s28 = sphi 0, %s26
      %s40 = sphi 0, %s42
      %s43 = sphi 0, %s40
      %s44 = sphi 0, %s43
      %s60 = sphi 0, %s44
      %s64 = sphi 0, %s64
      %s66 = sphi 0, %s64
      %s67 = sphi 0, %s66
      %s81 = sphi 0, %s67
      %s85 = sphi 0, %s85
      %s87 = sphi 0, %s85
      %s88 = sphi 0, %s87
      %s102 = sphi 0, %s88
      %s110 = sphi 0, %s112
      %s113 = sphi 0, %s110
      %s114 = sphi 0, %s113
      %s130 = sphi 0, %s114
    $region4: #{tpu_custom_call.1} parent=1 // loop_header_branch
      %19 = sbr.rel (%p17) target = $region8
    $region5: #{tpu_custom_call.1} parent=1 // loop_body
      %s21 = ssub.s32 %s16, 1
      %s22 = ssub.s32 %s16, 2
      %s29 = sadd.s32 1, %s24
      %p30 = scmp.ge.s32.totalorder %s29, 1
      %s31 = scalar_select %p30, 0, %s29
      %s32 = sadd.s32 1, %s23
      %s33 = scalar_select %p30, %s32, %s23
      %p34 = scmp.ge.s32.totalorder %s33, 2
      %s35 = scalar_select %p34, 0, %s33
      %s36 = ssub.s32 %s23, %s35
      %s37 = ssub.s32 %s24, %s31
      %s38 = sor.u32 %s36, %s37
      %p39 = scmp.eq.s32.totalorder %s38, 0
      %s41 = sadd.s32 %s40, 1
      %s42 = scalar_select %p39, %s40, %s41
      %p45 = pneg %p39
      %p46 = scmp.eq.s32.totalorder %s16, 1
      %p47 = por %p45, %p46
      %p48 = scmp.ne.s32.totalorder %s40, %s43
      %p49 = scmp.eq.s32.totalorder %s16, 0
      %p50 = por %p48, %p49
      %p51 = scmp.ne.s32.totalorder %s40, %s43
      %p52 = scmp.eq.s32.totalorder %s21, 1
      %p53 = por %p51, %p52
      %p54 = scmp.ne.s32.totalorder %s43, %s44
      %p55 = scmp.eq.s32.totalorder %s21, 0
      %p56 = por %p54, %p55
      %p57 = scmp.ne.s32.totalorder %s43, %s44
      %p58 = scmp.eq.s32.totalorder %s22, 1
      %p59 = por %p57, %p58
      %p61 = scmp.ne.s32.totalorder %s44, %s60
      %p62 = scmp.eq.s32.totalorder %s22, 0
      %p63 = por %p61, %p62
      %s65 = sadd.s32 %s64, 1
      %p68 = scmp.eq.s32.totalorder %s16, 1
      %p69 = scmp.ne.s32.totalorder %s64, %s66
      %p70 = scmp.eq.s32.totalorder %s16, 0
      %p71 = por %p69, %p70
      %p72 = scmp.ne.s32.totalorder %s64, %s66
      %p73 = scmp.eq.s32.totalorder %s21, 1
      %p74 = por %p72, %p73
      %p75 = scmp.ne.s32.totalorder %s66, %s67
      %p76 = scmp.eq.s32.totalorder %s21, 0
      %p77 = por %p75, %p76
      %p78 = scmp.ne.s32.totalorder %s66, %s67
      %p79 = scmp.eq.s32.totalorder %s22, 1
      %p80 = por %p78, %p79
      %p82 = scmp.ne.s32.totalorder %s67, %s81
      %p83 = scmp.eq.s32.totalorder %s22, 0
      %p84 = por %p82, %p83
      %s86 = sadd.s32 %s85, 1
      %p89 = scmp.eq.s32.totalorder %s16, 1
      %p90 = scmp.ne.s32.totalorder %s85, %s87
      %p91 = scmp.eq.s32.totalorder %s16, 0
      %p92 = por %p90, %p91
      %p93 = scmp.ne.s32.totalorder %s85, %s87
      %p94 = scmp.eq.s32.totalorder %s21, 1
      %p95 = por %p93, %p94
      %p96 = scmp.ne.s32.totalorder %s87, %s88
      %p97 = scmp.eq.s32.totalorder %s21, 0
      %p98 = por %p96, %p97
      %p99 = scmp.ne.s32.totalorder %s87, %s88
      %p100 = scmp.eq.s32.totalorder %s22, 1
      %p101 = por %p99, %p100
      %p103 = scmp.ne.s32.totalorder %s88, %s102
      %p104 = scmp.eq.s32.totalorder %s22, 0
      %p105 = por %p103, %p104
      %s106 = ssub.s32 %s23, %s35
      %s107 = ssub.s32 %s24, %s31
      %s108 = sor.u32 %s106, %s107
      %p109 = scmp.eq.s32.totalorder %s108, 0
      %s111 = sadd.s32 %s110, 1
      %s112 = scalar_select %p109, %s110, %s111
      %p115 = pneg %p109
      %p116 = scmp.eq.s32.totalorder %s16, 1
      %p117 = por %p115, %p116
      %p118 = scmp.ne.s32.totalorder %s110, %s113
      %p119 = scmp.eq.s32.totalorder %s16, 0
      %p120 = por %p118, %p119
      %p121 = scmp.ne.s32.totalorder %s110, %s113
      %p122 = scmp.eq.s32.totalorder %s21, 1
      %p123 = por %p121, %p122
      %p124 = scmp.ne.s32.totalorder %s113, %s114
      %p125 = scmp.eq.s32.totalorder %s21, 0
      %p126 = por %p124, %p125
      %p127 = scmp.ne.s32.totalorder %s113, %s114
      %p128 = scmp.eq.s32.totalorder %s22, 1
      %p129 = por %p127, %p128
      %p131 = scmp.ne.s32.totalorder %s114, %s130
      %p132 = scmp.eq.s32.totalorder %s22, 0
      %p133 = por %p131, %p132
      %p134 = scmp.le.s32.totalorder 1, %s16
      %p135 = scmp.lt.s32.totalorder %s16, 3
      %p136 = pnand %p134, %p135
      %p137 = pneg %p136
      // Predicated region
      $region9: #{tpu_custom_call.1} parent=5 // pred_check
        _
      $region10: #{tpu_custom_call.1} parent=5 // pred_check_branch
        %139 = sbr.rel (%p136) target = $region12
      $region11: #{tpu_custom_call.1} parent=5 // pred_region
        %s140 = ssub.s32 %s16, 1
        // Predicated region
        $region13: #{tpu_custom_call.1} parent=11 // pred_check
          %p141 = pneg %p77
        $region14: #{tpu_custom_call.1} parent=11 // pred_check_branch
          %143 = sbr.rel (%p141) target = $region16
        $region15: #{tpu_custom_call.1} parent=11 // pred_region
          %145 = vsyncadd [#allocation6], 0
          %s146 = sshll.u32 %s1, 4
          %s147 = int_to_ptr.hbm [resolvable:$true] %s146
          %s148 = sshll.u32 [#allocation5], 4
          %s149 = int_to_ptr.vmem [resolvable:$true] %s148
          %154 = dma.hbm_to_vmem [thread:$0]  %s147, 512, %s149, [#allocation6], 128, 128, 8
        $region16: #{tpu_custom_call.1} parent=11 // pred_fallthru
          _
        // Predicated region
        $region17: #{tpu_custom_call.1} parent=11 // pred_check
          %p155 = pneg %p98
        $region18: #{tpu_custom_call.1} parent=11 // pred_check_branch
          %157 = sbr.rel (%p155) target = $region20
        $region19: #{tpu_custom_call.1} parent=11 // pred_region
          _
        $region20: #{tpu_custom_call.1} parent=11 // pred_fallthru
          _
      $region12: #{tpu_custom_call.1} parent=5 // pred_fallthru
        _
      %p158 = scmp.lt.s32.totalorder %s16, 2
      // Predicated region
      $region21: #{tpu_custom_call.1} parent=5 // pred_check
        %p159 = pneg %p158
      $region22: #{tpu_custom_call.1} parent=5 // pred_check_branch
        %161 = sbr.rel (%p159) target = $region24
      $region23: #{tpu_custom_call.1} parent=5 // pred_region
        // Predicated region
        $region25: #{tpu_custom_call.1} parent=23 // pred_check
          %p162 = pneg %p50
        $region26: #{tpu_custom_call.1} parent=23 // pred_check_branch
          %164 = sbr.rel (%p162) target = $region28
        $region27: #{tpu_custom_call.1} parent=23 // pred_region
          %s165 = sand.u32 %s40, 1
          %s166 = scalar_lea.sflag [#allocation3], %s165
          %s167 = sand.u32 %s40, 1
          %s168 = smul.addr %s167, 16
          %s169 = scalar_lea.vmem [#allocation2], %s168
          %s170 = smul.u32 2, %s24
          %172 = vsyncadd %s166, 0
          %s173 = smul.addr %s23, 2
          %s174 = sadd.s32 %s170, %s173
          %s175 = smul.addr %s174, 8
          %s176 = scalar_lea.hbm %s0, %s175
          %s177 = sshll.u32 %s176, 4
          %s178 = int_to_ptr.hbm [resolvable:$true] %s177
          %s179 = sshll.u32 %s169, 4
          %s180 = int_to_ptr.vmem [resolvable:$true] %s179
          %185 = dma.hbm_to_vmem [thread:$0]  %s178, 256, %s180, %s166, 128, 128, 8
        $region28: #{tpu_custom_call.1} parent=23 // pred_fallthru
          _
      $region24: #{tpu_custom_call.1} parent=5 // pred_fallthru
        _
      %p186 = scmp.le.s32.totalorder 1, %s16
      %p187 = scmp.lt.s32.totalorder %s16, 3
      %p188 = pnand %p186, %p187
      %p189 = pneg %p188
      // Predicated region
      $region29: #{tpu_custom_call.1} parent=5 // pred_check
        _
      $region30: #{tpu_custom_call.1} parent=5 // pred_check_branch
        %191 = sbr.rel (%p188) target = $region32
      $region31: #{tpu_custom_call.1} parent=5 // pred_region
        %s192 = ssub.s32 %s16, 1
        %s193 = sand.u32 %s43, 1
        %s194 = scalar_lea.sflag [#allocation3], %s193
        %s195 = sand.u32 %s43, 1
        %s196 = smul.addr %s195, 16
        %s197 = scalar_lea.vmem [#allocation2], %s196
        // Predicated region
        $region33: #{tpu_custom_call.1} parent=31 // pred_check
          %p198 = pneg %p56
        $region34: #{tpu_custom_call.1} parent=31 // pred_check_branch
          %200 = sbr.rel (%p198) target = $region36
        $region35: #{tpu_custom_call.1} parent=31 // pred_region
          %202 = dma.done %s194, 256
        $region36: #{tpu_custom_call.1} parent=31 // pred_fallthru
          _
        // Predicated region
        $region37: #{tpu_custom_call.1} parent=31 // pred_check
          %p203 = pneg %p77
        $region38: #{tpu_custom_call.1} parent=31 // pred_check_branch
          %205 = sbr.rel (%p203) target = $region40
        $region39: #{tpu_custom_call.1} parent=31 // pred_region
          %207 = dma.done [#allocation6], 512
        $region40: #{tpu_custom_call.1} parent=31 // pred_fallthru
          _
        %s208 = sand.u32 %s43, 1
        %s209 = scalar_lea.sflag [#allocation3], %s208
        %s210 = sand.u32 %s43, 1
        %s211 = smul.addr %s210, 16
        %s212 = scalar_lea.vmem [#allocation2], %s211
        %p213 = pneg %p56
        %p214 = pneg %p53
        %p215 = pneg %p77
        %p216 = pneg %p74
        %p217 = pneg %p98
        %p218 = pneg %p95
        %p219 = pneg %p126
        %p220 = pneg %p123
        %s221 = sand.u32 %s113, 1
        %s222 = scalar_lea.sflag [#allocation4], %s221
        %s223 = sand.u32 %s113, 1
        %s224 = smul.addr %s223, 16
        %s225 = scalar_lea.vmem [#allocation7], %s224
        %s226 = smul.u32 2, %s26
        %s227 = smul.u32 2, %s26
        %v228 = vld [vmem:[%s197] sm:$0xff]
        %v229 = vld [vmem:[%s197 + $0x8] sm:$0xff]
        %v230 = vld [vmem:[#allocation5] sm:$0xff]
        %v231 = vld [vmem:[#allocation5 + $0x8] sm:$0xff]
        %v232 = vld [vmem:[#allocation5 + $0x10] sm:$0xff]
        %v233 = vld [vmem:[#allocation5 + $0x18] sm:$0xff]
        %v234 = vld [vmem:[%s2] sm:$0x1]
        %v236 = vperm.slane %v234, 0
        %vm238 = vcmask 261120
        %v240 = vsel %vm238, %v228, 0
        %v243 = vsel %vm238, %v229, 0
        %245 = vmatpush.msra.mxu0 0.0
        %246 = vmatpush.msra.mxu0 0.0
        %247 = vmatpush.msra.mxu0 0.0
        %248 = vmatpush.msra.mxu0 0.0
        %249 = vmatpush.msra.mxu0 0.0
        %250 = vmatpush.msra.mxu0 0.0
        %251 = vmatpush.msra.mxu0 0.0
        %252 = vmatpush.msra.mxu0 0.0
        %253 = vmatpush.msra.mxu0 0.0
        %254 = vmatpush.msra.mxu0 0.0
        %255 = vmatpush.msra.mxu0 0.0
        %256 = vmatpush.msra.mxu0 0.0
        %v257 = vand.u32 %v233, 4294901760
        %258 = vmatpush.msra.mxu0 %v257
        %v259 = vand.u32 %v232, 4294901760
        %260 = vmatpush.msra.mxu0 %v259
        %v261 = vand.u32 %v231, 4294901760
        %262 = vmatpush.msra.mxu0 %v261
        %v263 = vand.u32 %v230, 4294901760
        %264 = vmatpush.msra.mxu0 %v263
        %v265 = vand.u32 %v240, 4294901760
        %v266 = vsub.f32 %v240, %v265
        %v267 = vand.u32 %v266, 4294901760
        %v268 = vsub.f32 %v266, %v267
        %v269 = vand.u32 %v268, 4294901760
        %270 = vmatmul.f32.gmra.mxu0 %v269
        %v271 = vpop.f32.mrf.mxu0
        %v272 = vadd.f32 %v236, %v271
        %v273 = vand.u32 %v243, 4294901760
        %v274 = vsub.f32 %v243, %v273
        %v275 = vand.u32 %v274, 4294901760
        %v276 = vsub.f32 %v274, %v275
        %v277 = vand.u32 %v276, 4294901760
        %278 = vmatmul.f32.gmra.mxu0 %v277
        %v279 = vpop.f32.mrf.mxu0
        %v280 = vadd.f32 %v236, %v279
        %281 = vdwg.mxu0
        %282 = vmatpush.msra.mxu0 0.0
        %283 = vmatpush.msra.mxu0 0.0
        %284 = vmatpush.msra.mxu0 0.0
        %285 = vmatpush.msra.mxu0 0.0
        %286 = vmatpush.msra.mxu0 0.0
        %287 = vmatpush.msra.mxu0 0.0
        %288 = vmatpush.msra.mxu0 0.0
        %289 = vmatpush.msra.mxu0 0.0
        %290 = vmatpush.msra.mxu0 0.0
        %291 = vmatpush.msra.mxu0 0.0
        %292 = vmatpush.msra.mxu0 0.0
        %293 = vmatpush.msra.mxu0 0.0
        %v294 = vand.u32 %v233, 4294901760
        %v295 = vsub.f32 %v233, %v294
        %v296 = vand.u32 %v295, 4294901760
        %v297 = vsub.f32 %v295, %v296
        %v298 = vand.u32 %v297, 4294901760
        %299 = vmatpush.msra.mxu0 %v298
        %v300 = vand.u32 %v232, 4294901760
        %v301 = vsub.f32 %v232, %v300
        %v302 = vand.u32 %v301, 4294901760
        %v303 = vsub.f32 %v301, %v302
        %v304 = vand.u32 %v303, 4294901760
        %305 = vmatpush.msra.mxu0 %v304
        %v306 = vand.u32 %v231, 4294901760
        %v307 = vsub.f32 %v231, %v306
        %v308 = vand.u32 %v307, 4294901760
        %v309 = vsub.f32 %v307, %v308
        %v310 = vand.u32 %v309, 4294901760
        %311 = vmatpush.msra.mxu0 %v310
        %v312 = vand.u32 %v230, 4294901760
        %v313 = vsub.f32 %v230, %v312
        %v314 = vand.u32 %v313, 4294901760
        %v315 = vsub.f32 %v313, %v314
        %v316 = vand.u32 %v315, 4294901760
        %317 = vmatpush.msra.mxu0 %v316
        %v318 = vand.u32 %v240, 4294901760
        %319 = vmatmul.f32.gmra.mxu0 %v318
        %v320 = vpop.f32.mrf.mxu0
        %v321 = vadd.f32 %v272, %v320
        %v322 = vand.u32 %v243, 4294901760
        %323 = vmatmul.f32.gmra.mxu0 %v322
        %v324 = vpop.f32.mrf.mxu0
        %v325 = vadd.f32 %v280, %v324
        %326 = vdwg.mxu0
        %327 = vmatpush.msra.mxu0 0.0
        %328 = vmatpush.msra.mxu0 0.0
        %329 = vmatpush.msra.mxu0 0.0
        %330 = vmatpush.msra.mxu0 0.0
        %331 = vmatpush.msra.mxu0 0.0
        %332 = vmatpush.msra.mxu0 0.0
        %333 = vmatpush.msra.mxu0 0.0
        %334 = vmatpush.msra.mxu0 0.0
        %335 = vmatpush.msra.mxu0 0.0
        %336 = vmatpush.msra.mxu0 0.0
        %337 = vmatpush.msra.mxu0 0.0
        %338 = vmatpush.msra.mxu0 0.0
        %v339 = vand.u32 %v233, 4294901760
        %v340 = vsub.f32 %v233, %v339
        %341 = vmatpush.msra.mxu0 %v340
        %v342 = vand.u32 %v232, 4294901760
        %v343 = vsub.f32 %v232, %v342
        %344 = vmatpush.msra.mxu0 %v343
        %v345 = vand.u32 %v231, 4294901760
        %v346 = vsub.f32 %v231, %v345
        %347 = vmatpush.msra.mxu0 %v346
        %v348 = vand.u32 %v230, 4294901760
        %v349 = vsub.f32 %v230, %v348
        %350 = vmatpush.msra.mxu0 %v349
        %v351 = vand.u32 %v240, 4294901760
        %v352 = vsub.f32 %v240, %v351
        %353 = vmatmul.f32.gmra.mxu0 %v352
        %v354 = vpop.f32.mrf.mxu0
        %v355 = vadd.f32 %v321, %v354
        %v356 = vand.u32 %v243, 4294901760
        %v357 = vsub.f32 %v243, %v356
        %358 = vmatmul.f32.gmra.mxu0 %v357
        %v359 = vpop.f32.mrf.mxu0
        %v360 = vadd.f32 %v325, %v359
        %361 = vdwg.mxu0
        %362 = vmatpush.msra.mxu0 0.0
        %363 = vmatpush.msra.mxu0 0.0
        %364 = vmatpush.msra.mxu0 0.0
        %365 = vmatpush.msra.mxu0 0.0
        %366 = vmatpush.msra.mxu0 0.0
        %367 = vmatpush.msra.mxu0 0.0
        %368 = vmatpush.msra.mxu0 0.0
        %369 = vmatpush.msra.mxu0 0.0
        %370 = vmatpush.msra.mxu0 0.0
        %371 = vmatpush.msra.mxu0 0.0
        %372 = vmatpush.msra.mxu0 0.0
        %373 = vmatpush.msra.mxu0 0.0
        %v374 = vand.u32 %v233, 4294901760
        %375 = vmatpush.msra.mxu0 %v374
        %v376 = vand.u32 %v232, 4294901760
        %377 = vmatpush.msra.mxu0 %v376
        %v378 = vand.u32 %v231, 4294901760
        %379 = vmatpush.msra.mxu0 %v378
        %v380 = vand.u32 %v230, 4294901760
        %381 = vmatpush.msra.mxu0 %v380
        %v382 = vand.u32 %v240, 4294901760
        %v383 = vsub.f32 %v240, %v382
        %v384 = vand.u32 %v383, 4294901760
        %385 = vmatmul.f32.gmra.mxu0 %v384
        %v386 = vpop.f32.mrf.mxu0
        %v387 = vadd.f32 %v355, %v386
        %v388 = vand.u32 %v243, 4294901760
        %v389 = vsub.f32 %v243, %v388
        %v390 = vand.u32 %v389, 4294901760
        %391 = vmatmul.f32.gmra.mxu0 %v390
        %v392 = vpop.f32.mrf.mxu0
        %v393 = vadd.f32 %v360, %v392
        %394 = vdwg.mxu0
        %395 = vmatpush.msra.mxu0 0.0
        %396 = vmatpush.msra.mxu0 0.0
        %397 = vmatpush.msra.mxu0 0.0
        %398 = vmatpush.msra.mxu0 0.0
        %399 = vmatpush.msra.mxu0 0.0
        %400 = vmatpush.msra.mxu0 0.0
        %401 = vmatpush.msra.mxu0 0.0
        %402 = vmatpush.msra.mxu0 0.0
        %403 = vmatpush.msra.mxu0 0.0
        %404 = vmatpush.msra.mxu0 0.0
        %405 = vmatpush.msra.mxu0 0.0
        %406 = vmatpush.msra.mxu0 0.0
        %v407 = vand.u32 %v233, 4294901760
        %v408 = vsub.f32 %v233, %v407
        %v409 = vand.u32 %v408, 4294901760
        %410 = vmatpush.msra.mxu0 %v409
        %v411 = vand.u32 %v232, 4294901760
        %v412 = vsub.f32 %v232, %v411
        %v413 = vand.u32 %v412, 4294901760
        %414 = vmatpush.msra.mxu0 %v413
        %v415 = vand.u32 %v231, 4294901760
        %v416 = vsub.f32 %v231, %v415
        %v417 = vand.u32 %v416, 4294901760
        %418 = vmatpush.msra.mxu0 %v417
        %v419 = vand.u32 %v230, 4294901760
        %v420 = vsub.f32 %v230, %v419
        %v421 = vand.u32 %v420, 4294901760
        %422 = vmatpush.msra.mxu0 %v421
        %v423 = vand.u32 %v240, 4294901760
        %424 = vmatmul.f32.gmra.mxu0 %v423
        %v425 = vpop.f32.mrf.mxu0
        %v426 = vadd.f32 %v387, %v425
        %v427 = vand.u32 %v243, 4294901760
        %428 = vmatmul.f32.gmra.mxu0 %v427
        %v429 = vpop.f32.mrf.mxu0
        %v430 = vadd.f32 %v393, %v429
        %431 = vdwg.mxu0
        %432 = vmatpush.msra.mxu0 0.0
        %433 = vmatpush.msra.mxu0 0.0
        %434 = vmatpush.msra.mxu0 0.0
        %435 = vmatpush.msra.mxu0 0.0
        %436 = vmatpush.msra.mxu0 0.0
        %437 = vmatpush.msra.mxu0 0.0
        %438 = vmatpush.msra.mxu0 0.0
        %439 = vmatpush.msra.mxu0 0.0
        %440 = vmatpush.msra.mxu0 0.0
        %441 = vmatpush.msra.mxu0 0.0
        %442 = vmatpush.msra.mxu0 0.0
        %443 = vmatpush.msra.mxu0 0.0
        %v444 = vand.u32 %v233, 4294901760
        %445 = vmatpush.msra.mxu0 %v444
        %v446 = vand.u32 %v232, 4294901760
        %447 = vmatpush.msra.mxu0 %v446
        %v448 = vand.u32 %v231, 4294901760
        %449 = vmatpush.msra.mxu0 %v448
        %v450 = vand.u32 %v230, 4294901760
        %451 = vmatpush.msra.mxu0 %v450
        %v452 = vand.u32 %v240, 4294901760
        %453 = vmatmul.f32.gmra.mxu0 %v452
        %v454 = vpop.f32.mrf.mxu0
        %v455 = vadd.f32 %v426, %v454
        %v456 = vand.u32 %v243, 4294901760
        %457 = vmatmul.f32.gmra.mxu0 %v456
        %v458 = vpop.f32.mrf.mxu0
        %v459 = vadd.f32 %v430, %v458
        %460 = vdwg.mxu0
        %461 = vst.msk [vmem:[%s225] sm:$0xff] %vm238, %v455
        %462 = vst.msk [vmem:[%s225 + $0x8] sm:$0xff] %vm238, %v459
        %s463 = sand.u32 %s113, 1
        %s464 = scalar_lea.sflag [#allocation4], %s463
        %s465 = sand.u32 %s113, 1
        %s466 = smul.addr %s465, 16
        %s467 = scalar_lea.vmem [#allocation7], %s466
        // Predicated region
        $region41: #{tpu_custom_call.1} parent=31 // pred_check
          %p468 = pneg %p123
        $region42: #{tpu_custom_call.1} parent=31 // pred_check_branch
          %470 = sbr.rel (%p468) target = $region44
        $region43: #{tpu_custom_call.1} parent=31 // pred_region
          %s471 = smul.u32 2, %s26
          %473 = vsyncadd %s464, 0
          %s474 = smul.addr %s25, 2
          %s475 = sadd.s32 %s471, %s474
          %s476 = smul.addr %s475, 8
          %s477 = scalar_lea.hbm %s3, %s476
          %s478 = sshll.u32 %s467, 4
          %s479 = int_to_ptr.vmem [resolvable:$true] %s478
          %s480 = sshll.u32 %s477, 4
          %s481 = int_to_ptr.hbm [resolvable:$true] %s480
          %486 = dma.vmem_to_hbm [thread:$0]  %s479, 256, %s481, %s464, 128, 128, 8
        $region44: #{tpu_custom_call.1} parent=31 // pred_fallthru
          _
      $region32: #{tpu_custom_call.1} parent=5 // pred_fallthru
        _
      %p487 = scmp.le.s32.totalorder 2, %s16
      // Predicated region
      $region45: #{tpu_custom_call.1} parent=5 // pred_check
        %p488 = pneg %p487
      $region46: #{tpu_custom_call.1} parent=5 // pred_check_branch
        %490 = sbr.rel (%p488) target = $region48
      $region47: #{tpu_custom_call.1} parent=5 // pred_region
        %s491 = ssub.s32 %s16, 2
        // Predicated region
        $region49: #{tpu_custom_call.1} parent=47 // pred_check
          %p492 = pneg %p129
        $region50: #{tpu_custom_call.1} parent=47 // pred_check_branch
          %494 = sbr.rel (%p492) target = $region52
        $region51: #{tpu_custom_call.1} parent=47 // pred_region
          %s495 = sand.u32 %s114, 1
          %s496 = scalar_lea.sflag [#allocation4], %s495
          %s497 = sand.u32 %s114, 1
          %s498 = smul.addr %s497, 16
          %s499 = scalar_lea.vmem [#allocation7], %s498
          %501 = dma.done %s496, 256
        $region52: #{tpu_custom_call.1} parent=47 // pred_fallthru
          _
      $region48: #{tpu_custom_call.1} parent=5 // pred_fallthru
        _
    $region6: #{tpu_custom_call.1} parent=1 // loop_footer
      %s20 = sadd.s32 1, %s16
    $region7: #{tpu_custom_call.1} parent=1 // loop_footer_branch
      %15 = sbr.rel target = $region3
    $region8: #{tpu_custom_call.1} parent=1 // loop_exit
      _
    %502 = vsyncpa [#allocation3], 1
    %s503 = scalar_lea.sflag [#allocation3], 1
    %504 = vsyncpa %s503, 1
    %505 = vsyncpa [#allocation6], 1
    %506 = vsyncpa [#allocation4], 1
    %s507 = scalar_lea.sflag [#allocation4], 1
    %508 = vsyncpa %s507, 1

</llo_original>
